<compile_context>
chip_gen: v7x
topology: tpu7x:2x2x1
jax: 0.10.0
libtpu: 0.0.40
codegen_flags: <defaults>
</compile_context>

<pallas_src>
import jax
import jax.numpy as jnp
from jax.experimental import pallas as pl
from jax.experimental.pallas import tpu as pltpu


def mlp_kernel(x_ref, w1_ref, w2_ref, o_ref):
    # x_ref : (B_pad, in_num)
    # w1_ref: (round8(in_num+1), HID_PAD)  rows [0:in_num] = W1, row in_num = b1, rest 0
    # w2_ref: (round8(HID_PAD+1), OUT_PAD) rows [0:hid]    = W2, row HID_PAD = b2, rest 0
    # o_ref : (B_pad, OUT_PAD)
    x = x_ref[...]
    w1 = w1_ref[...]
    in_num = x.shape[1]
    hid_pad = w1.shape[1]

    # ---- Layer 1 on the VPU: K = in_num is tiny, so use broadcast multiply-adds.
    h = w1[in_num:in_num + 1, :]              # bias row (1, HID_PAD), broadcasts over batch
    for k in range(in_num):                   # static, fully unrolled
        h = h + x[:, k:k + 1] * w1[k:k + 1, :]
    h = jnp.maximum(h, 0.0)                   # (B_pad, HID_PAD); padded lanes stay exactly 0

    # ---- Layer 2 on the MXU: K = HID_PAD = 128 (aligned), lane-dense output.
    out = jnp.dot(h, w2_ref[:hid_pad, :], preferred_element_type=jnp.float32)
    out = out + w2_ref[hid_pad:hid_pad + 1, :]  # bias row (1, OUT_PAD)
    o_ref[...] = out.astype(o_ref.dtype)


def _round_up(n, m):
    return ((n + m - 1) // m) * m


def net_forward(x, w1, b1, w2, b2):
    """Pallas implementation of Net.forward.

    x:  (B, in_num)   float32
    w1: (in_num, hid) float32   (pre-transposed PyTorch weight: x @ W1)
    b1: (hid,)        float32
    w2: (hid, out)    float32
    b2: (out,)        float32
    returns (B, out) float32 logits
    """
    B, in_num = x.shape
    hid = w1.shape[1]
    out_num = w2.shape[1]

    f32 = jnp.float32
    hid_pad = _round_up(hid, 128)
    out_pad = _round_up(out_num, 128)
    b_pad = _round_up(B, 8)

    # Layer-1 slab: [W1; b1] stacked, zero-padded to lane-dense width.
    w1_slab = jnp.zeros((_round_up(in_num + 1, 8), hid_pad), f32)
    w1_slab = w1_slab.at[:in_num, :hid].set(w1.astype(f32))
    w1_slab = w1_slab.at[in_num, :hid].set(b1.astype(f32))

    # Layer-2 slab: [W2; b2] with bias row at index hid_pad; padded rows/cols are zero.
    w2_slab = jnp.zeros((_round_up(hid_pad + 1, 8), out_pad), f32)
    w2_slab = w2_slab.at[:hid, :out_num].set(w2.astype(f32))
    w2_slab = w2_slab.at[hid_pad, :out_num].set(b2.astype(f32))

    # Batch padded to a sublane multiple; padded rows are zeros and sliced off.
    x_pad = jnp.zeros((b_pad, in_num), f32).at[:B, :].set(x.astype(f32))

    vmem = pl.BlockSpec(memory_space=pltpu.MemorySpace.VMEM)
    out_padded = pl.pallas_call(
        mlp_kernel,
        out_shape=jax.ShapeDtypeStruct((b_pad, out_pad), f32),
        in_specs=[vmem, vmem, vmem],
        out_specs=vmem,
    )(x_pad, w1_slab, w2_slab)

    return out_padded[:B, :out_num]


def _init_linear(key, fan_in, fan_out):
    """Deterministic init mimicking torch.nn.Linear default (uniform +/- 1/sqrt(fan_in)).
    Returns weight in (fan_in, fan_out) layout (already transposed for x @ W)."""
    kw, kb = jax.random.split(key)
    bound = 1.0 / jnp.sqrt(fan_in)
    w = jax.random.uniform(kw, (fan_in, fan_out), jnp.float32, -bound, bound)
    b = jax.random.uniform(kb, (fan_out,), jnp.float32, -bound, bound)
    return w, b


def reference_forward(x, w1, b1, w2, b2):
    h = jnp.maximum(x @ w1 + b1, 0.0)
    return h @ w2 + b2


if __name__ == "__main__":
    # Iris classification: 4 input features, 3 classes; hidden width 32; batch 8.
    in_num, hid_num, out_num = 4, 32, 3
    batch = 8

    key = jax.random.PRNGKey(0)
    kx, k1, k2 = jax.random.split(key, 3)

    x = jax.random.normal(kx, (batch, in_num), jnp.float32)
    w1, b1 = _init_linear(k1, in_num, hid_num)
    w2, b2 = _init_linear(k2, hid_num, out_num)

    logits = net_forward(x, w1, b1, w2, b2)
    logits = jax.block_until_ready(logits)

    ref = reference_forward(x, w1, b1, w2, b2)
    assert logits.shape == (batch, out_num)
    assert jnp.allclose(logits, ref, atol=1e-5, rtol=1e-5)

    # TODO(synk): training path (SGD step, CrossEntropyLoss) is host-side torch code,
    # intentionally not translated to a kernel.
    print("KERNEL_OK")
</pallas_src>

<mosaic_0001>
module attributes {stable_mosaic.version = 11 : i64} {
  func.func @mlp_kernel(%arg0: memref<8x4xf32, #tpu.memory_space<vmem>>, %arg1: memref<8x128xf32, #tpu.memory_space<vmem>>, %arg2: memref<136x128xf32, #tpu.memory_space<vmem>>, %arg3: memref<8x128xf32, #tpu.memory_space<vmem>>) attributes {dimension_semantics = [], scalar_prefetch = 0 : i64, scratch_operands = 0 : i64, tpu.core_type = #tpu.core_type<tc>} {
    %c0 = arith.constant 0 : index
    %c0_0 = arith.constant 0 : index
    %0 = vector.load %arg0[%c0, %c0_0] : memref<8x4xf32, #tpu.memory_space<vmem>>, vector<8x4xf32>
    %c0_1 = arith.constant 0 : index
    %c0_2 = arith.constant 0 : index
    %1 = vector.load %arg1[%c0_1, %c0_2] : memref<8x128xf32, #tpu.memory_space<vmem>>, vector<8x128xf32>
    %2 = vector.extract_strided_slice %1 {offsets = [4, 0], sizes = [1, 128], strides = [1, 1]} : vector<8x128xf32> to vector<1x128xf32>
    %3 = vector.extract_strided_slice %0 {offsets = [0, 0], sizes = [8, 1], strides = [1, 1]} : vector<8x4xf32> to vector<8x1xf32>
    %4 = vector.extract_strided_slice %1 {offsets = [0, 0], sizes = [1, 128], strides = [1, 1]} : vector<8x128xf32> to vector<1x128xf32>
    %5 = vector.broadcast %3 : vector<8x1xf32> to vector<8x128xf32>
    %6 = vector.broadcast %4 : vector<1x128xf32> to vector<8x128xf32>
    %7 = arith.mulf %5, %6 : vector<8x128xf32>
    %8 = vector.broadcast %2 : vector<1x128xf32> to vector<8x128xf32>
    %9 = arith.addf %8, %7 : vector<8x128xf32>
    %10 = vector.extract_strided_slice %0 {offsets = [0, 1], sizes = [8, 1], strides = [1, 1]} : vector<8x4xf32> to vector<8x1xf32>
    %11 = vector.extract_strided_slice %1 {offsets = [1, 0], sizes = [1, 128], strides = [1, 1]} : vector<8x128xf32> to vector<1x128xf32>
    %12 = vector.broadcast %10 : vector<8x1xf32> to vector<8x128xf32>
    %13 = vector.broadcast %11 : vector<1x128xf32> to vector<8x128xf32>
    %14 = arith.mulf %12, %13 : vector<8x128xf32>
    %15 = arith.addf %9, %14 : vector<8x128xf32>
    %16 = vector.extract_strided_slice %0 {offsets = [0, 2], sizes = [8, 1], strides = [1, 1]} : vector<8x4xf32> to vector<8x1xf32>
    %17 = vector.extract_strided_slice %1 {offsets = [2, 0], sizes = [1, 128], strides = [1, 1]} : vector<8x128xf32> to vector<1x128xf32>
    %18 = vector.broadcast %16 : vector<8x1xf32> to vector<8x128xf32>
    %19 = vector.broadcast %17 : vector<1x128xf32> to vector<8x128xf32>
    %20 = arith.mulf %18, %19 : vector<8x128xf32>
    %21 = arith.addf %15, %20 : vector<8x128xf32>
    %22 = vector.extract_strided_slice %0 {offsets = [0, 3], sizes = [8, 1], strides = [1, 1]} : vector<8x4xf32> to vector<8x1xf32>
    %23 = vector.extract_strided_slice %1 {offsets = [3, 0], sizes = [1, 128], strides = [1, 1]} : vector<8x128xf32> to vector<1x128xf32>
    %24 = vector.broadcast %22 : vector<8x1xf32> to vector<8x128xf32>
    %25 = vector.broadcast %23 : vector<1x128xf32> to vector<8x128xf32>
    %26 = arith.mulf %24, %25 : vector<8x128xf32>
    %27 = arith.addf %21, %26 : vector<8x128xf32>
    %cst = arith.constant 0.000000e+00 : f32
    %28 = vector.broadcast %cst : f32 to vector<8x128xf32>
    %29 = arith.maximumf %27, %28 : vector<8x128xf32>
    %c0_3 = arith.constant 0 : index
    %c0_4 = arith.constant 0 : index
    %30 = vector.load %arg2[%c0_3, %c0_4] : memref<136x128xf32, #tpu.memory_space<vmem>>, vector<128x128xf32>
    %cst_5 = arith.constant dense<0.000000e+00> : vector<8x128xf32>
    %31 = tpu.matmul %29, %30, %cst_5 {dimension_numbers = #tpu.dot_dimension_numbers<[1], [0], [0], [1], [0, 0, 1, 1], [], []>} : vector<8x128xf32>, vector<128x128xf32>, vector<8x128xf32> -> vector<8x128xf32>
    %c128 = arith.constant 128 : index
    %c0_6 = arith.constant 0 : index
    %32 = vector.load %arg2[%c128, %c0_6] : memref<136x128xf32, #tpu.memory_space<vmem>>, vector<1x128xf32>
    %33 = vector.broadcast %32 : vector<1x128xf32> to vector<8x128xf32>
    %34 = arith.addf %31, %33 : vector<8x128xf32>
    %c0_7 = arith.constant 0 : index
    %c0_8 = arith.constant 0 : index
    %35 = vector.load %arg3[%c0_7, %c0_8] : memref<8x128xf32, #tpu.memory_space<vmem>>, vector<8x128xf32>
    tpu.vector_store %arg3[%c0_7, %c0_8], %34 {strides = array<i32>} : memref<8x128xf32, #tpu.memory_space<vmem>>, vector<8x128xf32>,
    return
  }
}

</mosaic_0001>

<llo_original>
// kernel: tpu_custom_call.1
$region0: #{tpu_custom_call.1}
  #allocation0 [shape = 'u32[]', space=smem, size = 0x4, offset = 0x4, fixed_abs, tag = 'smem constant byte address 0x4 - core index']
  #allocation1 [shape = 'u32[144,128]{1,0:T(1,128)}', space=vmem, size = 0x12000, scoped, tag = 'internal scratch']
  %s0 = inlined_call_operand.vmem [shape: f32[8,4], index: 0, kind: input, shape index: {}]
  %s1 = inlined_call_operand.vmem [shape: f32[8,128], index: 1, kind: input, shape index: {}]
  %s2 = inlined_call_operand.hbm [shape: f32[136,128], index: 2, kind: input, shape index: {}]
  %s3 = inlined_call_operand.hbm [shape: f32[8,128], index: 3, kind: output, shape index: {}]
  %s4 = sld [smem:[#allocation0]]
  $region26: #{tpu_custom_call.1} parent=0
    _
  %s6 = ssub.s32 1, %s4
  %s7 = scalar_select 0, %s6, %s4
  $region1: #{tpu_custom_call.1} parent=0
    #allocation2 [shape = 'u8[69632]{0}', space=vmem, size = 0x11000, scoped, tag = 'input window, operand 2, single buffered']
    #allocation3 [shape = 's32[1]{0}', space=sflag, size = 0x4, scoped, tag = 'scoped memory for tpu_custom_call.1']
    #allocation4 [shape = 's32[1]{0}', space=sflag, size = 0x4, scoped, tag = 'scoped memory for tpu_custom_call.1']
    #allocation5 [shape = 'u8[4096]{0}', space=vmem, size = 0x1000, scoped, tag = 'output window, operand 0, single buffered']
    %8 = vsyncpa [#allocation3], 0
    %9 = vsyncpa [#allocation4], 0
    // Predicated region
    $region2: #{tpu_custom_call.1} parent=1 // pred_check
      _
    $region3: #{tpu_custom_call.1} parent=1 // pred_check_branch
      %11 = sbr.rel (0) target = $region5
    $region4: #{tpu_custom_call.1} parent=1 // pred_region
      _
    $region5: #{tpu_custom_call.1} parent=1 // pred_fallthru
      _
    // Predicated region
    $region6: #{tpu_custom_call.1} parent=1 // pred_check
      _
    $region7: #{tpu_custom_call.1} parent=1 // pred_check_branch
      %13 = sbr.rel (0) target = $region9
    $region8: #{tpu_custom_call.1} parent=1 // pred_region
      _
    $region9: #{tpu_custom_call.1} parent=1 // pred_fallthru
      _
    // Predicated region
    $region10: #{tpu_custom_call.1} parent=1 // pred_check
      _
    $region11: #{tpu_custom_call.1} parent=1 // pred_check_branch
      %15 = sbr.rel (0) target = $region13
    $region12: #{tpu_custom_call.1} parent=1 // pred_region
      %s17 = ssub.s32 2176, 2176
      %18 = vsyncadd [#allocation3], %s17
      %s19 = sshll.u32 [#allocation2], 4
      %s20 = int_to_ptr.vmem [resolvable:$true] %s19
      %25 = dma.hbm_to_vmem [thread:$0]  %s2, 2176, %s20, [#allocation3], 128, 128, 8
    $region13: #{tpu_custom_call.1} parent=1 // pred_fallthru
      _
    // Predicated region
    $region14: #{tpu_custom_call.1} parent=1 // pred_check
      _
    $region15: #{tpu_custom_call.1} parent=1 // pred_check_branch
      %27 = sbr.rel (0) target = $region17
    $region16: #{tpu_custom_call.1} parent=1 // pred_region
      %28 = dma.done [#allocation3], 2176
    $region17: #{tpu_custom_call.1} parent=1 // pred_fallthru
      _
    %v29 = vld [vmem:[%s0] sm:$0xff]
    %v30 = vld [vmem:[%s1] sm:$0xff]
    %32 = vset.pattern.permute.xlu0 0
    %33 = vperm.xlu0 %32, %v29
    %v34 = vpop.permute.xlu0 %33
    %v36 = vlaneseq
    %v37 = vshrl.u32 %v36, 7
    %v38 = vsub.s32 0, %v37
    %v39 = vrot.slane %v30, %v38
    %v40 = vmul.f32 %v34, %v39
    %v41 = vlaneseq
    %v42 = vshrl.u32 %v41, 7
    %v43 = vsub.s32 4, %v42
    %v44 = vrot.slane %v30, %v43
    %v45 = vadd.f32 %v44, %v40
    %46 = vset.pattern.permute.xlu0 1
    %47 = vperm.xlu0 %46, %v29
    %v48 = vpop.permute.xlu0 %47
    %v50 = vlaneseq
    %v51 = vshrl.u32 %v50, 7
    %v52 = vsub.s32 1, %v51
    %v53 = vrot.slane %v30, %v52
    %v54 = vmul.f32 %v48, %v53
    %v55 = vadd.f32 %v45, %v54
    %56 = vset.pattern.permute.xlu0 2
    %57 = vperm.xlu0 %56, %v29
    %v58 = vpop.permute.xlu0 %57
    %v60 = vlaneseq
    %v61 = vshrl.u32 %v60, 7
    %v62 = vsub.s32 2, %v61
    %v63 = vrot.slane %v30, %v62
    %v64 = vmul.f32 %v58, %v63
    %v65 = vadd.f32 %v55, %v64
    %66 = vset.pattern.permute.xlu0 3
    %67 = vperm.xlu0 %66, %v29
    %v68 = vpop.permute.xlu0 %67
    %v70 = vlaneseq
    %v71 = vshrl.u32 %v70, 7
    %v72 = vsub.s32 3, %v71
    %v73 = vrot.slane %v30, %v72
    %v74 = vmul.f32 %v68, %v73
    %v75 = vadd.f32 %v65, %v74
    %v76 = vmax.f32 %v75, 0.0
    %v77 = vld [vmem:[#allocation2] sm:$0xff]
    %v78 = vld [vmem:[#allocation2 + $0x8] sm:$0xff]
    %v79 = vld [vmem:[#allocation2 + $0x10] sm:$0xff]
    %v80 = vld [vmem:[#allocation2 + $0x18] sm:$0xff]
    %v81 = vld [vmem:[#allocation2 + $0x20] sm:$0xff]
    %v82 = vld [vmem:[#allocation2 + $0x28] sm:$0xff]
    %v83 = vld [vmem:[#allocation2 + $0x30] sm:$0xff]
    %v84 = vld [vmem:[#allocation2 + $0x38] sm:$0xff]
    %v85 = vld [vmem:[#allocation2 + $0x40] sm:$0xff]
    %v86 = vld [vmem:[#allocation2 + $0x48] sm:$0xff]
    %v87 = vld [vmem:[#allocation2 + $0x50] sm:$0xff]
    %v88 = vld [vmem:[#allocation2 + $0x58] sm:$0xff]
    %v89 = vld [vmem:[#allocation2 + $0x60] sm:$0xff]
    %v90 = vld [vmem:[#allocation2 + $0x68] sm:$0xff]
    %v91 = vld [vmem:[#allocation2 + $0x70] sm:$0xff]
    %v92 = vld [vmem:[#allocation2 + $0x78] sm:$0xff]
    %v93 = vld [vmem:[#allocation2 + $0x80] sm:$0x1]
    %v94 = vlaneseq
    %v95 = vshrl.u32 %v94, 7
    %v96 = vsub.s32 0, %v95
    %v97 = vrot.slane %v93, %v96
    %98 = vmatprep.subr.mxu0 0.0
    %99 = vmatpush1.msra.mxu0 %v77
    %100 = vmatprep.subr.mxu0 0.0
    %101 = vmatpush1.msra.mxu0 %v78
    %102 = vmatprep.subr.mxu0 0.0
    %103 = vmatpush1.msra.mxu0 %v79
    %104 = vmatprep.subr.mxu0 0.0
    %105 = vmatpush1.msra.mxu0 %v80
    %106 = vmatprep.subr.mxu0 0.0
    %107 = vmatpush1.msra.mxu0 %v81
    %108 = vmatprep.subr.mxu0 0.0
    %109 = vmatpush1.msra.mxu0 %v82
    %110 = vmatprep.subr.mxu0 0.0
    %111 = vmatpush1.msra.mxu0 %v83
    %112 = vmatprep.subr.mxu0 0.0
    %113 = vmatpush1.msra.mxu0 %v84
    %114 = vmatprep.subr.mxu0 0.0
    %115 = vmatpush1.msra.mxu0 %v85
    %116 = vmatprep.subr.mxu0 0.0
    %117 = vmatpush1.msra.mxu0 %v86
    %118 = vmatprep.subr.mxu0 0.0
    %119 = vmatpush1.msra.mxu0 %v87
    %120 = vmatprep.subr.mxu0 0.0
    %121 = vmatpush1.msra.mxu0 %v88
    %122 = vmatprep.subr.mxu0 0.0
    %123 = vmatpush1.msra.mxu0 %v89
    %124 = vmatprep.subr.mxu0 0.0
    %125 = vmatpush1.msra.mxu0 %v90
    %126 = vmatprep.subr.mxu0 0.0
    %127 = vmatpush1.msra.mxu0 %v91
    %128 = vmatprep.subr.mxu0 0.0
    %129 = vmatpush1.msra.mxu0 %v92
    %130 = vmatprep.subr.mxu0 0.0
    %131 = vmatpush1.msra.mxu0 0.0
    %132 = vmatprep.subr.mxu0 0.0
    %133 = vmatpush1.msra.mxu0 0.0
    %134 = vmatprep.subr.mxu0 0.0
    %135 = vmatpush1.msra.mxu0 0.0
    %136 = vmatprep.subr.mxu0 0.0
    %137 = vmatpush1.msra.mxu0 0.0
    %138 = vmatprep.subr.mxu0 0.0
    %139 = vmatpush1.msra.mxu0 0.0
    %140 = vmatprep.subr.mxu0 0.0
    %141 = vmatpush1.msra.mxu0 0.0
    %142 = vmatprep.subr.mxu0 0.0
    %143 = vmatpush1.msra.mxu0 0.0
    %144 = vmatprep.subr.mxu0 0.0
    %145 = vmatpush1.msra.mxu0 0.0
    %146 = vmatprep.subr.mxu0 0.0
    %147 = vmatpush1.msra.mxu0 0.0
    %148 = vmatprep.subr.mxu0 0.0
    %149 = vmatpush1.msra.mxu0 0.0
    %150 = vmatprep.subr.mxu0 0.0
    %151 = vmatpush1.msra.mxu0 0.0
    %152 = vmatprep.subr.mxu0 0.0
    %153 = vmatpush1.msra.mxu0 0.0
    %154 = vmatprep.subr.mxu0 0.0
    %155 = vmatpush1.msra.mxu0 0.0
    %156 = vmatprep.subr.mxu0 0.0
    %157 = vmatpush1.msra.mxu0 0.0
    %158 = vmatprep.subr.mxu0 0.0
    %159 = vmatpush1.msra.mxu0 0.0
    %160 = vmatprep.subr.mxu0 0.0
    %161 = vmatpush1.msra.mxu0 0.0
    %162 = vmatprep.mubr.f32.mxu0 0.0
    %163 = vmatmul.mubr.f32.gmra.mrb[0].mxu0 %v76
    %v164 = vpop.f32.mrb[0].mxu0
    %v165 = vadd.f32 %v97, %v164
    %v166 = vpop.f32.mrb[0].mxu0
    %167 = vdwg.mxu0
    %168 = vst [vmem:[#allocation5] sm:$0xff] %v165
    // Predicated region
    $region18: #{tpu_custom_call.1} parent=1 // pred_check
      _
    $region19: #{tpu_custom_call.1} parent=1 // pred_check_branch
      %170 = sbr.rel (0) target = $region21
    $region20: #{tpu_custom_call.1} parent=1 // pred_region
      %s172 = ssub.s32 128, 128
      %173 = vsyncadd [#allocation4], %s172
      %s175 = sshll.u32 [#allocation5], 4
      %s176 = int_to_ptr.vmem [resolvable:$true] %s175
      %178 = dma.vmem_to_hbm [thread:$0]  %s176, 128, %s3, [#allocation4]
    $region21: #{tpu_custom_call.1} parent=1 // pred_fallthru
      _
    // Predicated region
    $region22: #{tpu_custom_call.1} parent=1 // pred_check
      _
    $region23: #{tpu_custom_call.1} parent=1 // pred_check_branch
      %180 = sbr.rel (0) target = $region25
    $region24: #{tpu_custom_call.1} parent=1 // pred_region
      %181 = dma.done [#allocation4], 128
    $region25: #{tpu_custom_call.1} parent=1 // pred_fallthru
      _
    %182 = vsyncpa [#allocation3], 1
    %183 = vsyncpa [#allocation4], 1

</llo_original>
